<compile_context>
chip_gen: v7x
topology: tpu7x:2x2x1
jax: 0.10.0
libtpu: 0.0.40
codegen_flags: <defaults>
</compile_context>

<pallas_src>
import functools

import jax
import jax.numpy as jnp
from jax.experimental import pallas as pl
from jax.experimental.pallas import tpu as pltpu


def _round_up(x, m):
    return (x + m - 1) // m * m


@functools.lru_cache(maxsize=1)
def _vmem_capacity_bytes():
    """Physical VMEM per core (generation-aware; conservative fallback)."""
    try:
        return int(pltpu.get_tpu_info().vmem_capacity_bytes)
    except Exception:
        return 64 << 20  # v7x per-core VMEM; safe lower bound everywhere


# ---------------------------------------------------------------------------
# Tiled linear kernel:  out = x @ w + b     (lane-dense output tiles)
# ---------------------------------------------------------------------------
def _linear_kernel(x_ref, w_ref, b_ref, o_ref):
    acc = jnp.dot(x_ref[...], w_ref[...], preferred_element_type=jnp.float32)
    o_ref[...] = (acc + b_ref[...]).astype(o_ref.dtype)


def pallas_linear(x, w, b, *, tm_max=None, tn_max=None):
    """x (M, K) @ w (K, N) + b (1/N,) -> (M, N) float32."""
    M, K = x.shape
    Kw, N = w.shape
    assert K == Kw
    cap = _vmem_capacity_bytes()
    # Bigger tiles on 128 MiB parts (v5e/v6e); keep modest on v7x (64 MiB).
    if tm_max is None:
        tm_max = 512 if cap >= (100 << 20) else 256
    if tn_max is None:
        tn_max = 1024 if cap >= (100 << 20) else 512

    tm = min(tm_max, _round_up(M, 8))
    tn = min(tn_max, _round_up(N, 128))

    xsz = jnp.dtype(x.dtype).itemsize
    wsz = jnp.dtype(w.dtype).itemsize

    def vmem_need(tm_, tn_):
        # double-buffered streamed blocks: x, w, bias (sublane-padded), out
        return 2 * (tm_ * K * xsz + K * tn_ * wsz + 8 * tn_ * 4 + tm_ * tn_ * 4)

    while vmem_need(tm, tn) + (8 << 20) > cap and (tm > 8 or tn > 128):
        if tn > 128:
            tn = max(128, _round_up(tn // 2, 128))
        else:
            tm = max(8, _round_up(tm // 2, 8))

    Mp = _round_up(M, tm)
    Np = _round_up(N, tn)

    xp = jnp.pad(x, ((0, Mp - M), (0, 0)))
    wp = jnp.pad(w, ((0, 0), (0, Np - N)))
    bp = jnp.pad(b.reshape(1, N).astype(jnp.float32), ((0, 0), (0, Np - N)))

    vmem_limit = int(min(cap, max(vmem_need(tm, tn) + (8 << 20), 32 << 20)))

    # N axis OUTER so the (K, N) weight is DMA'd from HBM exactly once; the
    # (usually much smaller) activation is the re-read operand.
    out = pl.pallas_call(
        _linear_kernel,
        out_shape=jax.ShapeDtypeStruct((Mp, Np), jnp.float32),
        grid=(Np // tn, Mp // tm),
        in_specs=[
            pl.BlockSpec((tm, K), lambda j, i: (i, 0)),
            pl.BlockSpec((K, tn), lambda j, i: (0, j)),
            pl.BlockSpec((1, tn), lambda j, i: (0, j)),
        ],
        out_specs=pl.BlockSpec((tm, tn), lambda j, i: (i, j)),
        compiler_params=pltpu.CompilerParams(
            dimension_semantics=("parallel", "parallel"),
            vmem_limit_bytes=vmem_limit),
    )(xp, wp, bp)
    return out[:M, :N]


# ---------------------------------------------------------------------------
# Recurrent LSTM kernel (one grid step == one block of TB timesteps)
# ---------------------------------------------------------------------------
def _lstm_kernel(x0p_ref, h0_ref, whh0_ref, wihr_ref, whhr_ref, b_ref,
                 htop_ref, h_st, c_st, *, num_layers, hidden_size,
                 steps_per_block):
    H = hidden_size
    L = num_layers
    TB = steps_per_block
    Bs = h_st.shape[1]

    # Initialise recurrent state once per batch shard: h <- hidden, c <- 0.
    @pl.when(pl.program_id(1) == 0)
    def _():
        h_st[...] = h0_ref[...].astype(jnp.float32)
        c_st[...] = jnp.zeros_like(c_st)

    cdt = whh0_ref.dtype  # matmul-input dtype (bf16/f32); gate math stays f32

    def gates_to_state(gates, c_prev):
        # PyTorch gate order (i, f, g, o).
        i_g = jax.nn.sigmoid(gates[:, 0 * H:1 * H])
        f_g = jax.nn.sigmoid(gates[:, 1 * H:2 * H])
        g_g = jnp.tanh(gates[:, 2 * H:3 * H])
        o_g = jax.nn.sigmoid(gates[:, 3 * H:4 * H])
        c_new = f_g * c_prev + i_g * g_g
        h_new = o_g * jnp.tanh(c_new)
        return h_new, c_new

    # Pull state into values for the TB inner steps (one scratch read/write
    # per block instead of per step).
    h = [h_st[l] for l in range(L)]
    c = [c_st[l] for l in range(L)]
    # Broadcast each layer's bias once per block, not once per step/layer.
    bias = [jnp.broadcast_to(b_ref[l], (Bs, 4 * H)) for l in range(1, L)]

    for t in range(TB):  # statically unrolled timestep block
        # Layer 0: (x @ W_ih0 + b0) precomputed by the GEMM prologue; only the
        # recurrent matmul stays on the serial path.
        gates = x0p_ref[:, t, :] + jnp.dot(
            h[0].astype(cdt), whh0_ref[...], preferred_element_type=jnp.float32)
        h[0], c[0] = gates_to_state(gates, c[0])
        inp = h[0]
        # Layers 1..L-1: two dots (no per-step concat / VMEM copy).
        for l in range(1, L):
            gates = (jnp.dot(inp.astype(cdt), wihr_ref[l - 1],
                             preferred_element_type=jnp.float32)
                     + jnp.dot(h[l].astype(cdt), whhr_ref[l - 1],
                               preferred_element_type=jnp.float32)
                     + bias[l - 1])
            h[l], c[l] = gates_to_state(gates, c[l])
            inp = h[l]
        htop_ref[:, t, :] = inp.astype(htop_ref.dtype)

    # Write the block-final state back to the persistent scratch.
    for l in range(L):
        h_st[l] = h[l]
        c_st[l] = c[l]


# ---------------------------------------------------------------------------
# Wrapper
# ---------------------------------------------------------------------------
def decoder_lstm_forward(x, hidden, params, *, param_dtype=jnp.bfloat16,
                         batch_shards=1, steps_per_block=8):
    """x: (B, T, H) batch_first, hidden: (L, B, H) -> logits (B, T, V) f32.

    Matches DecoderLSTM.forward: the cell state starts at zeros. `param_dtype`
    is the matmul-input dtype (bf16 is MXU-native on v5e/v6e/v7x); gate math
    and the h/c state stay float32.  Set batch_shards=2 on v7x so the serial
    recurrence runs on both TensorCores.
    """
    B, T, H = x.shape
    L = hidden.shape[0]
    wih_T, whh_T, b, wout_T, bout = params
    V = wout_T.shape[1]

    batch_shards = max(1, int(batch_shards))
    TB = max(8, _round_up(int(steps_per_block), 8))

    # Pad batch to a sublane multiple (per shard) and time to a TB multiple;
    # padded rows/steps are computed and sliced off at the end.
    # TODO(synk): also pad H to a multiple of 128 (needs per-gate re-padding of
    # the 4H weight axis) so gate slices are vreg-tile aligned on real configs.
    Bp = _round_up(B, 8 * batch_shards)
    Bs = Bp // batch_shards
    Tp = _round_up(T, TB)

    xpad = jnp.pad(x, ((0, Bp - B), (0, Tp - T), (0, 0)))
    h0 = jnp.pad(hidden, ((0, 0), (0, Bp - B), (0, 0))).astype(jnp.float32)

    wih_c = wih_T.astype(param_dtype)
    whh_c = whh_T.astype(param_dtype)
    wout_c = wout_T.astype(param_dtype)
    b_f32 = b.astype(jnp.float32)                        # (L, 1, 4H)

    # ---- Prologue: layer-0 input projection for all timesteps, batch-first.
    x0p = pallas_linear(xpad.reshape(Bp * Tp, H).astype(param_dtype),
                        wih_c[0], b_f32[0])              # (Bp*Tp, 4H) f32
    x0p = x0p.reshape(Bp, Tp, 4 * H)

    # Weights for layers >= 1 (dummy single layer if L == 1; never read then).
    if L > 1:
        wih_r, whh_r = wih_c[1:], whh_c[1:]
    else:
        wih_r = jnp.zeros((1, H, 4 * H), param_dtype)
        whh_r = jnp.zeros((1, H, 4 * H), param_dtype)
    Lr = wih_r.shape[0]

    vmem_cap = _vmem_capacity_bytes()
    dsz = jnp.dtype(param_dtype).itemsize
    kernel = functools.partial(_lstm_kernel, num_layers=L, hidden_size=H,
                               steps_per_block=TB)

    def run_recurrence(single_buffer_resident):
        nbuf = 1 if single_buffer_resident else 2
        need = (2 * Bs * TB * 4 * H * 4                  # streamed x0p blocks
                + 2 * Bs * TB * H * 4                    # streamed htop blocks
                + nbuf * (L * Bs * H * 4                 # h0
                          + H * 4 * H * dsz              # W_hh layer 0
                          + 2 * Lr * H * 4 * H * dsz     # W_ih/W_hh layers >=1
                          + L * 8 * 4 * H * 4)           # biases (sublane pad)
                + 2 * L * Bs * H * 4)                    # h/c scratch
        vmem_limit = int(min(vmem_cap, max(need + (8 << 20), 32 << 20)))
        # TODO(synk): if the resident weights alone exceed vmem_cap (very large
        # L*H on v7x), stream W_ih/W_hh per layer with a manual double-buffered
        # DMA instead of keeping all layers resident.

        res_kw = ({"pipeline_mode": pl.Buffered(1)} if single_buffer_resident
                  else {})
        return pl.pallas_call(
            kernel,
            out_shape=jax.ShapeDtypeStruct((Bp, Tp, H), jnp.float32),
            grid=(batch_shards, Tp // TB),
            in_specs=[
                pl.BlockSpec((Bs, TB, 4 * H), lambda bi, ti: (bi, ti, 0)),
                pl.BlockSpec((L, Bs, H), lambda bi, ti: (0, bi, 0), **res_kw),
                pl.BlockSpec((H, 4 * H), lambda bi, ti: (0, 0), **res_kw),
                pl.BlockSpec((Lr, H, 4 * H), lambda bi, ti: (0, 0, 0), **res_kw),
                pl.BlockSpec((Lr, H, 4 * H), lambda bi, ti: (0, 0, 0), **res_kw),
                pl.BlockSpec((L, 1, 4 * H), lambda bi, ti: (0, 0, 0), **res_kw),
            ],
            out_specs=pl.BlockSpec((Bs, TB, H), lambda bi, ti: (bi, ti, 0)),
            scratch_shapes=[
                pltpu.VMEM((L, Bs, H), jnp.float32),     # h state, all layers
                pltpu.VMEM((L, Bs, H), jnp.float32),     # c state, all layers
            ],
            compiler_params=pltpu.CompilerParams(
                dimension_semantics=("parallel", "arbitrary"),
                vmem_limit_bytes=vmem_limit),
        )(x0p, h0, whh_c[0], wih_r, whh_r, b_f32)

    try:
        htop = run_recurrence(True)      # single-buffer resident weights
    except Exception:
        htop = run_recurrence(False)     # fallback: default double-buffering

    # ---- Epilogue: output projection, batch-first (no transposes anywhere).
    logits = pallas_linear(htop.reshape(Bp * Tp, H).astype(param_dtype),
                           wout_c, bout)                 # (Bp*Tp, V) f32
    return logits.reshape(Bp, Tp, V)[:B, :T, :]


# ---------------------------------------------------------------------------
# Params / reference
# ---------------------------------------------------------------------------
def init_params(key, hidden_size, vocab_size, num_layers):
    """Deterministic init matching PyTorch shapes (U(-1/sqrt(H), 1/sqrt(H)))."""
    H, V, L = hidden_size, vocab_size, num_layers
    k = 1.0 / float(H) ** 0.5
    keys = jax.random.split(key, 4 * L + 2)
    wih, whh, b = [], [], []
    for l in range(L):
        w_ih = jax.random.uniform(keys[4 * l + 0], (4 * H, H), jnp.float32, -k, k)
        w_hh = jax.random.uniform(keys[4 * l + 1], (4 * H, H), jnp.float32, -k, k)
        b_ih = jax.random.uniform(keys[4 * l + 2], (4 * H,), jnp.float32, -k, k)
        b_hh = jax.random.uniform(keys[4 * l + 3], (4 * H,), jnp.float32, -k, k)
        wih.append(w_ih.T)                       # (H, 4H)
        whh.append(w_hh.T)                       # (H, 4H)
        b.append((b_ih + b_hh)[None, :])         # (1, 4H)
    w_out = jax.random.uniform(keys[-2], (V, H), jnp.float32, -k, k)
    b_out = jax.random.uniform(keys[-1], (V,), jnp.float32, -k, k)
    return (jnp.stack(wih), jnp.stack(whh), jnp.stack(b),
            w_out.T, b_out[None, :])


def ref_forward(x, hidden, params):
    """Pure-JAX reference of the PyTorch forward (for validation)."""
    wih_T, whh_T, b, wout_T, bout = params
    L = hidden.shape[0]
    B, T, H = x.shape
    h = [hidden[l] for l in range(L)]
    c = [jnp.zeros_like(hidden[l]) for l in range(L)]
    outs = []
    for t in range(T):
        inp = x[:, t, :]
        for l in range(L):
            gates = inp @ wih_T[l] + h[l] @ whh_T[l] + b[l]
            i = jax.nn.sigmoid(gates[:, :H])
            f = jax.nn.sigmoid(gates[:, H:2 * H])
            g = jnp.tanh(gates[:, 2 * H:3 * H])
            o = jax.nn.sigmoid(gates[:, 3 * H:4 * H])
            c[l] = f * c[l] + i * g
            h[l] = o * jnp.tanh(c[l])
            inp = h[l]
        outs.append(inp @ wout_T + bout)
    return jnp.stack(outs, axis=1)


if __name__ == "__main__":
    B, T, H, V, L = 2, 8, 32, 64, 2

    key = jax.random.PRNGKey(0)
    kx, kh, kp = jax.random.split(key, 3)
    x = jax.random.normal(kx, (B, T, H), jnp.float32)
    hidden = jax.random.normal(kh, (L, B, H), jnp.float32)
    params = init_params(kp, H, V, L)

    ref = ref_forward(x, hidden, params)

    # Full-precision path (bit-for-bit-ish check against the f32 reference).
    out_f32 = decoder_lstm_forward(x, hidden, params, param_dtype=jnp.float32)
    out_f32 = jax.block_until_ready(out_f32)
    assert out_f32.shape == (B, T, V), out_f32.shape
    assert jnp.allclose(out_f32, ref, rtol=1e-4, atol=1e-4), (
        float(jnp.max(jnp.abs(out_f32 - ref))))

    # Batch-sharded variant (two-TensorCore layout on v7x), still f32-exact.
    out_sh = decoder_lstm_forward(x, hidden, params, param_dtype=jnp.float32,
                                  batch_shards=2)
    out_sh = jax.block_until_ready(out_sh)
    assert jnp.allclose(out_sh, ref, rtol=1e-4, atol=1e-4), (
        float(jnp.max(jnp.abs(out_sh - ref))))

    # Default bf16-matmul path (gate math / state stay f32): loose check.
    out_bf16 = jax.block_until_ready(decoder_lstm_forward(x, hidden, params))
    assert out_bf16.shape == (B, T, V), out_bf16.shape
    assert float(jnp.max(jnp.abs(out_bf16 - ref))) < 0.25

    print("KERNEL_OK")
</pallas_src>

<mosaic_0001>
module attributes {stable_mosaic.version = 11 : i64} {
  func.func @_linear_kernel(%arg0: i32, %arg1: i32, %arg2: memref<64x32xf32, #tpu.memory_space<vmem>>, %arg3: memref<32x128xf32, #tpu.memory_space<vmem>>, %arg4: memref<1x128xf32, #tpu.memory_space<vmem>>, %arg5: memref<64x128xf32, #tpu.memory_space<vmem>>) attributes {dimension_semantics = [#tpu.dimension_semantics<parallel>, #tpu.dimension_semantics<parallel>], iteration_bounds = array<i64: 1, 1>, scalar_prefetch = 0 : i64, scratch_operands = 0 : i64, tpu.core_type = #tpu.core_type<tc>, window_params = [{transform_indices = @transform_0, window_bounds = array<i64: 64, 32>}, {transform_indices = @transform_1, window_bounds = array<i64: 32, 128>}, {transform_indices = @transform_2, window_bounds = array<i64: 1, 128>}, {transform_indices = @transform_3, window_bounds = array<i64: 64, 128>}]} {
    %c0 = arith.constant 0 : index
    %c0_0 = arith.constant 0 : index
    %0 = vector.load %arg2[%c0, %c0_0] : memref<64x32xf32, #tpu.memory_space<vmem>>, vector<64x32xf32>
    %c0_1 = arith.constant 0 : index
    %c0_2 = arith.constant 0 : index
    %1 = vector.load %arg3[%c0_1, %c0_2] : memref<32x128xf32, #tpu.memory_space<vmem>>, vector<32x128xf32>
    %cst = arith.constant dense<0.000000e+00> : vector<64x128xf32>
    %2 = tpu.matmul %0, %1, %cst {dimension_numbers = #tpu.dot_dimension_numbers<[1], [0], [0], [1], [0, 0, 1, 1], [], []>} : vector<64x32xf32>, vector<32x128xf32>, vector<64x128xf32> -> vector<64x128xf32>
    %c0_3 = arith.constant 0 : index
    %c0_4 = arith.constant 0 : index
    %3 = vector.load %arg4[%c0_3, %c0_4] : memref<1x128xf32, #tpu.memory_space<vmem>>, vector<1x128xf32>
    %4 = vector.broadcast %3 : vector<1x128xf32> to vector<64x128xf32>
    %5 = arith.addf %2, %4 : vector<64x128xf32>
    %c0_5 = arith.constant 0 : index
    %c0_6 = arith.constant 0 : index
    %6 = vector.load %arg5[%c0_5, %c0_6] : memref<64x128xf32, #tpu.memory_space<vmem>>, vector<64x128xf32>
    tpu.vector_store %arg5[%c0_5, %c0_6], %5 {strides = array<i32>} : memref<64x128xf32, #tpu.memory_space<vmem>>, vector<64x128xf32>,
    return
  }
  func.func @transform_0(%arg0: i32, %arg1: i32) -> (i32, i32) {
    %c0_i32 = arith.constant 0 : i32
    %c0_i32_0 = arith.constant 0 : i32
    return %arg1, %c0_i32 : i32, i32
  }
  func.func @transform_1(%arg0: i32, %arg1: i32) -> (i32, i32) {
    %c0_i32 = arith.constant 0 : i32
    %c0_i32_0 = arith.constant 0 : i32
    return %c0_i32, %arg0 : i32, i32
  }
  func.func @transform_2(%arg0: i32, %arg1: i32) -> (i32, i32) {
    %c0_i32 = arith.constant 0 : i32
    %c0_i32_0 = arith.constant 0 : i32
    return %c0_i32, %arg0 : i32, i32
  }
  func.func @transform_3(%arg0: i32, %arg1: i32) -> (i32, i32) {
    %c0_i32 = arith.constant 0 : i32
    return %arg1, %arg0 : i32, i32
  }
}

</mosaic_0001>

<llo_original>
// kernel: tpu_custom_call.1
$region0: #{tpu_custom_call.1}
  #allocation0 [shape = 'u32[]', space=smem, size = 0x4, offset = 0x4, fixed_abs, tag = 'smem constant byte address 0x4 - core index']
  #allocation1 [shape = 'u32[144,128]{1,0:T(1,128)}', space=vmem, size = 0x12000, scoped, tag = 'internal scratch']
  %s0 = inlined_call_operand.vmem [shape: f32[64,32], index: 0, kind: input, shape index: {}]
  %s1 = inlined_call_operand.vmem [shape: f32[32,128], index: 1, kind: input, shape index: {}]
  %s2 = inlined_call_operand.vmem [shape: f32[1,128], index: 2, kind: input, shape index: {}]
  %s3 = inlined_call_operand.hbm [shape: f32[64,128], index: 3, kind: output, shape index: {}]
  %s4 = sld [smem:[#allocation0]]
  $region22: #{tpu_custom_call.1} parent=0
    _
  %s6 = ssub.s32 1, %s4
  %s7 = scalar_select 0, %s6, %s4
  $region1: #{tpu_custom_call.1} parent=0
    #allocation2 [shape = 'u8[32768]{0}', space=vmem, size = 0x8000, scoped, tag = 'output window, operand 0, single buffered']
    #allocation3 [shape = 's32[1]{0}', space=sflag, size = 0x4, scoped, tag = 'scoped memory for tpu_custom_call.1']
    %8 = vsyncpa [#allocation3], 0
    // Predicated region
    $region2: #{tpu_custom_call.1} parent=1 // pred_check
      _
    $region3: #{tpu_custom_call.1} parent=1 // pred_check_branch
      %10 = sbr.rel (0) target = $region5
    $region4: #{tpu_custom_call.1} parent=1 // pred_region
      _
    $region5: #{tpu_custom_call.1} parent=1 // pred_fallthru
      _
    // Predicated region
    $region6: #{tpu_custom_call.1} parent=1 // pred_check
      _
    $region7: #{tpu_custom_call.1} parent=1 // pred_check_branch
      %12 = sbr.rel (0) target = $region9
    $region8: #{tpu_custom_call.1} parent=1 // pred_region
      _
    $region9: #{tpu_custom_call.1} parent=1 // pred_fallthru
      _
    // Predicated region
    $region10: #{tpu_custom_call.1} parent=1 // pred_check
      _
    $region11: #{tpu_custom_call.1} parent=1 // pred_check_branch
      %14 = sbr.rel (0) target = $region13
    $region12: #{tpu_custom_call.1} parent=1 // pred_region
      _
    $region13: #{tpu_custom_call.1} parent=1 // pred_fallthru
      _
    %v15 = vld [vmem:[%s0] sm:$0xff]
    %v16 = vld [vmem:[%s0 + $0x8] sm:$0xff]
    %v17 = vld [vmem:[%s0 + $0x10] sm:$0xff]
    %v18 = vld [vmem:[%s0 + $0x18] sm:$0xff]
    %v19 = vld [vmem:[%s0 + $0x20] sm:$0xff]
    %v20 = vld [vmem:[%s0 + $0x28] sm:$0xff]
    %v21 = vld [vmem:[%s0 + $0x30] sm:$0xff]
    %v22 = vld [vmem:[%s0 + $0x38] sm:$0xff]
    %v23 = vld [vmem:[%s1] sm:$0xff]
    %v24 = vld [vmem:[%s1 + $0x8] sm:$0xff]
    %v25 = vld [vmem:[%s1 + $0x10] sm:$0xff]
    %v26 = vld [vmem:[%s1 + $0x18] sm:$0xff]
    %v27 = vld [vmem:[%s2] sm:$0x1]
    %v29 = vlaneseq
    %v30 = vshrl.u32 %v29, 7
    %v31 = vsub.s32 0, %v30
    %v32 = vrot.slane %v27, %v31
    %vm34 = vcmask 261120
    %v36 = vsel %vm34, %v15, 0
    %v39 = vsel %vm34, %v16, 0
    %v42 = vsel %vm34, %v17, 0
    %v45 = vsel %vm34, %v18, 0
    %v48 = vsel %vm34, %v19, 0
    %v51 = vsel %vm34, %v20, 0
    %v54 = vsel %vm34, %v21, 0
    %v57 = vsel %vm34, %v22, 0
    %59 = vmatprep.subr.mxu0 0.0
    %60 = vmatpush1.msra.mxu0 %v23
    %61 = vmatprep.subr.mxu0 0.0
    %62 = vmatpush1.msra.mxu0 %v24
    %63 = vmatprep.subr.mxu0 0.0
    %64 = vmatpush1.msra.mxu0 %v25
    %65 = vmatprep.subr.mxu0 0.0
    %66 = vmatpush1.msra.mxu0 %v26
    %67 = vmatprep.subr.mxu0 0.0
    %68 = vmatpush1.msra.mxu0 0.0
    %69 = vmatprep.subr.mxu0 0.0
    %70 = vmatpush1.msra.mxu0 0.0
    %71 = vmatprep.subr.mxu0 0.0
    %72 = vmatpush1.msra.mxu0 0.0
    %73 = vmatprep.subr.mxu0 0.0
    %74 = vmatpush1.msra.mxu0 0.0
    %75 = vmatprep.subr.mxu0 0.0
    %76 = vmatpush1.msra.mxu0 0.0
    %77 = vmatprep.subr.mxu0 0.0
    %78 = vmatpush1.msra.mxu0 0.0
    %79 = vmatprep.subr.mxu0 0.0
    %80 = vmatpush1.msra.mxu0 0.0
    %81 = vmatprep.subr.mxu0 0.0
    %82 = vmatpush1.msra.mxu0 0.0
    %83 = vmatprep.subr.mxu0 0.0
    %84 = vmatpush1.msra.mxu0 0.0
    %85 = vmatprep.subr.mxu0 0.0
    %86 = vmatpush1.msra.mxu0 0.0
    %87 = vmatprep.subr.mxu0 0.0
    %88 = vmatpush1.msra.mxu0 0.0
    %89 = vmatprep.subr.mxu0 0.0
    %90 = vmatpush1.msra.mxu0 0.0
    %91 = vmatprep.subr.mxu0 0.0
    %92 = vmatpush1.msra.mxu0 0.0
    %93 = vmatprep.subr.mxu0 0.0
    %94 = vmatpush1.msra.mxu0 0.0
    %95 = vmatprep.subr.mxu0 0.0
    %96 = vmatpush1.msra.mxu0 0.0
    %97 = vmatprep.subr.mxu0 0.0
    %98 = vmatpush1.msra.mxu0 0.0
    %99 = vmatprep.subr.mxu0 0.0
    %100 = vmatpush1.msra.mxu0 0.0
    %101 = vmatprep.subr.mxu0 0.0
    %102 = vmatpush1.msra.mxu0 0.0
    %103 = vmatprep.subr.mxu0 0.0
    %104 = vmatpush1.msra.mxu0 0.0
    %105 = vmatprep.subr.mxu0 0.0
    %106 = vmatpush1.msra.mxu0 0.0
    %107 = vmatprep.subr.mxu0 0.0
    %108 = vmatpush1.msra.mxu0 0.0
    %109 = vmatprep.subr.mxu0 0.0
    %110 = vmatpush1.msra.mxu0 0.0
    %111 = vmatprep.subr.mxu0 0.0
    %112 = vmatpush1.msra.mxu0 0.0
    %113 = vmatprep.subr.mxu0 0.0
    %114 = vmatpush1.msra.mxu0 0.0
    %115 = vmatprep.subr.mxu0 0.0
    %116 = vmatpush1.msra.mxu0 0.0
    %117 = vmatprep.subr.mxu0 0.0
    %118 = vmatpush1.msra.mxu0 0.0
    %119 = vmatprep.subr.mxu0 0.0
    %120 = vmatpush1.msra.mxu0 0.0
    %121 = vmatprep.subr.mxu0 0.0
    %122 = vmatpush1.msra.mxu0 0.0
    %123 = vmatprep.mubr.f32.mxu0 0.0
    %124 = vmatmul.mubr.f32.gmra.mrb[0].mxu0 %v36
    %v125 = vpop.f32.mrb[0].mxu0
    %v126 = vadd.f32 %v32, %v125
    %v127 = vpop.f32.mrb[0].mxu0
    %128 = vmatprep.mubr.f32.mxu0 0.0
    %129 = vmatmul.mubr.f32.gmra.mrb[0].mxu0 %v39
    %v130 = vpop.f32.mrb[0].mxu0
    %v131 = vadd.f32 %v32, %v130
    %v132 = vpop.f32.mrb[0].mxu0
    %133 = vmatprep.mubr.f32.mxu0 0.0
    %134 = vmatmul.mubr.f32.gmra.mrb[0].mxu0 %v42
    %v135 = vpop.f32.mrb[0].mxu0
    %v136 = vadd.f32 %v32, %v135
    %v137 = vpop.f32.mrb[0].mxu0
    %138 = vmatprep.mubr.f32.mxu0 0.0
    %139 = vmatmul.mubr.f32.gmra.mrb[0].mxu0 %v45
    %v140 = vpop.f32.mrb[0].mxu0
    %v141 = vadd.f32 %v32, %v140
    %v142 = vpop.f32.mrb[0].mxu0
    %143 = vmatprep.mubr.f32.mxu0 0.0
    %144 = vmatmul.mubr.f32.gmra.mrb[0].mxu0 %v48
    %v145 = vpop.f32.mrb[0].mxu0
    %v146 = vadd.f32 %v32, %v145
    %v147 = vpop.f32.mrb[0].mxu0
    %148 = vmatprep.mubr.f32.mxu0 0.0
    %149 = vmatmul.mubr.f32.gmra.mrb[0].mxu0 %v51
    %v150 = vpop.f32.mrb[0].mxu0
    %v151 = vadd.f32 %v32, %v150
    %v152 = vpop.f32.mrb[0].mxu0
    %153 = vmatprep.mubr.f32.mxu0 0.0
    %154 = vmatmul.mubr.f32.gmra.mrb[0].mxu0 %v54
    %v155 = vpop.f32.mrb[0].mxu0
    %v156 = vadd.f32 %v32, %v155
    %v157 = vpop.f32.mrb[0].mxu0
    %158 = vmatprep.mubr.f32.mxu0 0.0
    %159 = vmatmul.mubr.f32.gmra.mrb[0].mxu0 %v57
    %v160 = vpop.f32.mrb[0].mxu0
    %v161 = vadd.f32 %v32, %v160
    %v162 = vpop.f32.mrb[0].mxu0
    %163 = vdwg.mxu0
    %164 = vst [vmem:[#allocation2] sm:$0xff] %v126
    %165 = vst [vmem:[#allocation2 + $0x8] sm:$0xff] %v131
    %166 = vst [vmem:[#allocation2 + $0x10] sm:$0xff] %v136
    %167 = vst [vmem:[#allocation2 + $0x18] sm:$0xff] %v141
    %168 = vst [vmem:[#allocation2 + $0x20] sm:$0xff] %v146
    %169 = vst [vmem:[#allocation2 + $0x28] sm:$0xff] %v151
    %170 = vst [vmem:[#allocation2 + $0x30] sm:$0xff] %v156
    %171 = vst [vmem:[#allocation2 + $0x38] sm:$0xff] %v161
    // Predicated region
    $region14: #{tpu_custom_call.1} parent=1 // pred_check
      _
    $region15: #{tpu_custom_call.1} parent=1 // pred_check_branch
      %173 = sbr.rel (0) target = $region17
    $region16: #{tpu_custom_call.1} parent=1 // pred_region
      %s175 = ssub.s32 1024, 1024
      %176 = vsyncadd [#allocation3], %s175
      %s177 = sshll.u32 [#allocation2], 4
      %s178 = int_to_ptr.vmem [resolvable:$true] %s177
      %183 = dma.vmem_to_hbm [thread:$0]  %s178, 1024, %s3, [#allocation3], 128, 128, 8
    $region17: #{tpu_custom_call.1} parent=1 // pred_fallthru
      _
    // Predicated region
    $region18: #{tpu_custom_call.1} parent=1 // pred_check
      _
    $region19: #{tpu_custom_call.1} parent=1 // pred_check_branch
      %185 = sbr.rel (0) target = $region21
    $region20: #{tpu_custom_call.1} parent=1 // pred_region
      %186 = dma.done [#allocation3], 1024
    $region21: #{tpu_custom_call.1} parent=1 // pred_fallthru
      _
    %187 = vsyncpa [#allocation3], 1

</llo_original>
